<compile_context>
chip_gen: v5e
topology: v5e:2x2
jax: 0.10.0
libtpu: 0.0.40
codegen_flags: <defaults>
</compile_context>

<pallas_src>
import functools

import jax
import jax.numpy as jnp
import numpy as np
from jax.experimental import pallas as pl
from jax.experimental.pallas import tpu as pltpu

KSIZE = 8                       # conv kernel size
DIL = 2                         # dilation
PAD = DIL * (KSIZE - 1) // 2    # = 7; 'same' padding is symmetric here
LPAD_AL = 8                     # left pad rounded up to a sublane multiple
RPAD_AL = ((PAD + 7) // 8) * 8  # = 8; aligned right-pad zero region


# -----------------------------------------------------------------------------
# Pallas kernel: full residual block for Bn batch elements per grid step.
# -----------------------------------------------------------------------------
def _block_kernel(xs_ref, wc_ref, bc_ref, s1_ref, t1_ref,
                  w2_ref, b2_ref, s2_ref, t2_ref,
                  out_ref, act_ref, *, Bn, L, Cpad):
    M = Bn * L
    xs = xs_ref[...].reshape(M, xs_ref.shape[2])          # (M, CWpad) bf16

    # ---- conv1 (dilated, im2col) + BN-folded 1x1 residual conv: ONE matmul ---
    yr = jnp.dot(xs, wc_ref[...],
                 preferred_element_type=jnp.float32) + bc_ref[...]   # (M, 2*Cpad)
    y = jnp.maximum(yr[:, :Cpad], 0.0)                    # relu(conv1)
    r = yr[:, Cpad:]                                      # residual (BN folded in wrapper)
    y = jnp.maximum(y * s1_ref[...] + t1_ref[...], 0.0)   # relu(bn1)
    # dropout: eval-mode identity.

    # ---- activation into padded VMEM scratch, sublane-aligned write at row 8 --
    # zero only the pad rows (aligned 8-row stores), write the data block once.
    act_ref[:, pl.ds(0, LPAD_AL), :] = jnp.zeros((Bn, LPAD_AL, Cpad), jnp.float32)
    act_ref[:, pl.ds(LPAD_AL + L, RPAD_AL), :] = jnp.zeros((Bn, RPAD_AL, Cpad),
                                                           jnp.float32)
    act_ref[:, pl.ds(LPAD_AL, L), :] = y.reshape(Bn, L, Cpad)

    # ---- conv2: build (M, K*Cpad) im2col slab from K tap slices -> ONE matmul -
    taps = []
    for k in range(KSIZE):
        st = LPAD_AL - PAD + k * DIL                      # static start (1,3,...,15)
        taps.append(act_ref[:, pl.ds(st, L), :].reshape(M, Cpad))
    slab2 = jnp.concatenate(taps, axis=-1).astype(jnp.bfloat16)       # (M, K*Cpad)

    z = jnp.dot(slab2, w2_ref[...],
                preferred_element_type=jnp.float32) + b2_ref[...]     # (M, Cpad)
    z = jnp.maximum(z, 0.0)                               # relu(conv2)
    z = z * s2_ref[...] + t2_ref[...]                     # bn2
    z = jnp.maximum(z + r, 0.0)                           # relu(+ residual)

    # ---- MaxPool1d(k=2, stride=2): vectorized, single full-block store --------
    pooled = jnp.max(z.reshape(M // 2, 2, Cpad), axis=1)  # (M//2, Cpad)
    out_ref[...] = pooled.reshape(Bn, L // 2, Cpad)


# -----------------------------------------------------------------------------
# Wrapper: parameter plumbing + pallas_call
# -----------------------------------------------------------------------------
def _bn_affine(gamma, beta, mean, var, eps=1e-5):
    scale = gamma / jnp.sqrt(var + eps)
    shift = beta - mean * scale
    return scale.astype(jnp.float32), shift.astype(jnp.float32)


def _pad_row(v, n):
    v = v.astype(jnp.float32)
    return jnp.pad(v, (0, n - v.shape[0])).reshape(1, n)


def dilated_conv1d_basic(x, p):
    """x: (N, C_in, L) float32 in PyTorch NCL layout. Returns (N, C_out, L//2)."""
    N, Cin, L = x.shape
    Cout, _, K = p['w1'].shape
    assert K == KSIZE and L % 2 == 0
    Cpad = max(128, ((Cout + 127) // 128) * 128)          # lane-dense channels
    CW = (K + 1) * Cin                                    # K conv1 taps + center (1x1)
    CWpad = max(128, ((CW + 127) // 128) * 128)

    # batch tile: as many batch elements per grid step as keeps M = Bn*L modest
    Bn = 1
    for cand in range(N, 0, -1):
        if N % cand == 0 and cand * L <= 512:
            Bn = cand
            break

    # ---- conv1 im2col slab built wrapper-side ('same' padding handled here) ---
    xf = x.astype(jnp.float32)
    xp = jnp.pad(xf, ((0, 0), (0, 0), (PAD, PAD)))                     # (N, Cin, L+2*PAD)
    taps = [xp[:, :, k * DIL: k * DIL + L] for k in range(K)]          # K x (N, Cin, L)
    taps.append(xf)                                                    # center tap (1x1 residual)
    slab = jnp.transpose(jnp.concatenate(taps, axis=1), (0, 2, 1))     # (N, L, (K+1)*Cin)
    slab = jnp.pad(slab, ((0, 0), (0, 0), (0, CWpad - CW))).astype(jnp.bfloat16)

    # ---- BN affines (inference) -----------------------------------------------
    s1, t1 = _bn_affine(p['g1'], p['beta1'], p['m1'], p['v1'])
    s2, t2 = _bn_affine(p['g2'], p['beta2'], p['m2'], p['v2'])
    sd, td = _bn_affine(p['gd'], p['betad'], p['md'], p['vd'])

    # ---- combined conv1 + (BN-folded) 1x1 residual weight, lane-padded, bf16 --
    w1_col = jnp.transpose(p['w1'], (2, 1, 0)).reshape(K * Cin, Cout)  # (K*Cin, Cout)
    wd_col = (p['wd'][:, :, 0] * sd[:, None]).T                        # (Cin, Cout), BN folded
    wc = jnp.zeros((CWpad, 2 * Cpad), jnp.float32)
    wc = wc.at[:K * Cin, :Cout].set(w1_col)
    wc = wc.at[K * Cin:K * Cin + Cin, Cpad:Cpad + Cout].set(wd_col)
    wc = wc.astype(jnp.bfloat16)

    bd_eff = p['bd'] * sd + td
    bc = jnp.concatenate([_pad_row(p['b1'], Cpad), _pad_row(bd_eff, Cpad)], axis=1)

    # ---- conv2 im2col weight (K*Cpad, Cpad), bf16 ------------------------------
    w2_t = jnp.transpose(p['w2'], (2, 1, 0))                           # (K, Cout, Cout)
    w2_col = jnp.zeros((K, Cpad, Cpad), jnp.float32).at[:, :Cout, :Cout].set(w2_t)
    w2_col = w2_col.reshape(K * Cpad, Cpad).astype(jnp.bfloat16)

    b2p = _pad_row(p['b2'], Cpad)
    s1p, t1p = _pad_row(s1, Cpad), _pad_row(t1, Cpad)
    s2p, t2p = _pad_row(s2, Cpad), _pad_row(t2, Cpad)

    LBUF = LPAD_AL + L + RPAD_AL

    def rep(a):
        return pl.BlockSpec(a.shape, lambda g: (0,) * a.ndim)

    kernel = functools.partial(_block_kernel, Bn=Bn, L=L, Cpad=Cpad)

    out_nlc = pl.pallas_call(
        kernel,
        out_shape=jax.ShapeDtypeStruct((N, L // 2, Cpad), jnp.float32),
        grid_spec=pltpu.PrefetchScalarGridSpec(
            num_scalar_prefetch=0,
            grid=(N // Bn,),
            in_specs=[pl.BlockSpec((Bn, L, CWpad), lambda g: (g, 0, 0)),
                      rep(wc), rep(bc), rep(s1p), rep(t1p),
                      rep(w2_col), rep(b2p), rep(s2p), rep(t2p)],
            out_specs=pl.BlockSpec((Bn, L // 2, Cpad), lambda g: (g, 0, 0)),
            scratch_shapes=[pltpu.VMEM((Bn, LBUF, Cpad), jnp.float32)]),
        compiler_params=pltpu.CompilerParams(
            dimension_semantics=("parallel",)),
    )(slab, wc, bc, s1p, t1p, w2_col, b2p, s2p, t2p)

    # slice away the lane padding, back to PyTorch NCL layout
    return jnp.transpose(out_nlc[:, :, :Cout], (0, 2, 1))              # (N, C_out, L//2)


# -----------------------------------------------------------------------------
# Pure-JAX reference (mirrors PyTorch semantics) for a correctness check.
# -----------------------------------------------------------------------------
def _conv1d_same(x, w, b, dilation):
    K = w.shape[-1]
    total = dilation * (K - 1)
    left = total // 2
    y = jax.lax.conv_general_dilated(
        x, w, window_strides=(1,), padding=[(left, total - left)],
        rhs_dilation=(dilation,), dimension_numbers=('NCH', 'OIH', 'NCH'))
    return y + b[None, :, None]


def _bn_ref(x, gamma, beta, mean, var, eps=1e-5):
    scale = gamma / jnp.sqrt(var + eps)
    shift = beta - mean * scale
    return x * scale[None, :, None] + shift[None, :, None]


def reference(x, p):
    r = _conv1d_same(x, p['wd'], p['bd'], 1)
    r = _bn_ref(r, p['gd'], p['betad'], p['md'], p['vd'])
    y = jax.nn.relu(_conv1d_same(x, p['w1'], p['b1'], DIL))
    y = jax.nn.relu(_bn_ref(y, p['g1'], p['beta1'], p['m1'], p['v1']))
    z = jax.nn.relu(_conv1d_same(y, p['w2'], p['b2'], DIL))
    z = _bn_ref(z, p['g2'], p['beta2'], p['m2'], p['v2'])
    z = jax.nn.relu(z + r)
    N, C, L = z.shape
    return jnp.max(z.reshape(N, C, L // 2, 2), axis=-1)


# -----------------------------------------------------------------------------
# Deterministic parameter init + driver
# -----------------------------------------------------------------------------
def init_params(key, in_channels, filter_num, kernel_size):
    ks = jax.random.split(key, 18)
    nrm = lambda k, s, sc=0.1: sc * jax.random.normal(k, s, jnp.float32)
    p = {
        'w1': nrm(ks[0], (filter_num, in_channels, kernel_size)),
        'b1': nrm(ks[1], (filter_num,)),
        'w2': nrm(ks[2], (filter_num, filter_num, kernel_size)),
        'b2': nrm(ks[3], (filter_num,)),
        'wd': nrm(ks[4], (filter_num, in_channels, 1)),
        'bd': nrm(ks[5], (filter_num,)),
        'g1': 1.0 + nrm(ks[6], (filter_num,)),
        'beta1': nrm(ks[7], (filter_num,)),
        'm1': nrm(ks[8], (filter_num,)),
        'v1': 1.0 + jnp.abs(nrm(ks[9], (filter_num,))),
        'g2': 1.0 + nrm(ks[10], (filter_num,)),
        'beta2': nrm(ks[11], (filter_num,)),
        'm2': nrm(ks[12], (filter_num,)),
        'v2': 1.0 + jnp.abs(nrm(ks[13], (filter_num,))),
        'gd': 1.0 + nrm(ks[14], (filter_num,)),
        'betad': nrm(ks[15], (filter_num,)),
        'md': nrm(ks[16], (filter_num,)),
        'vd': 1.0 + jnp.abs(nrm(ks[17], (filter_num,))),
    }
    return p


if __name__ == "__main__":
    key = jax.random.PRNGKey(0)
    k_x, k_p = jax.random.split(key)

    N, C_in, L = 2, 4, 16
    filter_num = 21

    x = jax.random.normal(k_x, (N, C_in, L), jnp.float32)
    params = init_params(k_p, C_in, filter_num, KSIZE)

    out = dilated_conv1d_basic(x, params)
    out = jax.block_until_ready(out)

    ref = jax.block_until_ready(reference(x, params))
    assert out.shape == (N, filter_num, L // 2), out.shape
    # bf16 MXU inputs, f32 accumulate/elementwise -> slightly looser tolerance.
    np.testing.assert_allclose(np.asarray(out), np.asarray(ref), rtol=2e-2, atol=2e-2)

    print("KERNEL_OK")
</pallas_src>

<mosaic_0001>
module attributes {stable_mosaic.version = 11 : i64} {
  func.func @_block_kernel(%arg0: i32, %arg1: memref<2x16x128xbf16, #tpu.memory_space<vmem>>, %arg2: memref<128x256xbf16, #tpu.memory_space<vmem>>, %arg3: memref<1x256xf32, #tpu.memory_space<vmem>>, %arg4: memref<1x128xf32, #tpu.memory_space<vmem>>, %arg5: memref<1x128xf32, #tpu.memory_space<vmem>>, %arg6: memref<1024x128xbf16, #tpu.memory_space<vmem>>, %arg7: memref<1x128xf32, #tpu.memory_space<vmem>>, %arg8: memref<1x128xf32, #tpu.memory_space<vmem>>, %arg9: memref<1x128xf32, #tpu.memory_space<vmem>>, %arg10: memref<2x8x128xf32, #tpu.memory_space<vmem>>, %arg11: memref<2x32x128xf32, #tpu.memory_space<vmem>>) attributes {dimension_semantics = [#tpu.dimension_semantics<parallel>], iteration_bounds = array<i64: 1>, scalar_prefetch = 0 : i64, scratch_operands = 1 : i64, tpu.core_type = #tpu.core_type<tc>, window_params = [{transform_indices = @transform_0, window_bounds = array<i64: 2, 16, 128>}, {pipeline_mode = #tpu.pipeline_mode<synchronous>, transform_indices = @transform_1, window_bounds = array<i64: 128, 256>}, {pipeline_mode = #tpu.pipeline_mode<synchronous>, transform_indices = @transform_2, window_bounds = array<i64: 1, 256>}, {pipeline_mode = #tpu.pipeline_mode<synchronous>, transform_indices = @transform_3, window_bounds = array<i64: 1, 128>}, {pipeline_mode = #tpu.pipeline_mode<synchronous>, transform_indices = @transform_4, window_bounds = array<i64: 1, 128>}, {pipeline_mode = #tpu.pipeline_mode<synchronous>, transform_indices = @transform_5, window_bounds = array<i64: 1024, 128>}, {pipeline_mode = #tpu.pipeline_mode<synchronous>, transform_indices = @transform_6, window_bounds = array<i64: 1, 128>}, {pipeline_mode = #tpu.pipeline_mode<synchronous>, transform_indices = @transform_7, window_bounds = array<i64: 1, 128>}, {pipeline_mode = #tpu.pipeline_mode<synchronous>, transform_indices = @transform_8, window_bounds = array<i64: 1, 128>}, {transform_indices = @transform_9, window_bounds = array<i64: 2, 8, 128>}]} {
    %c0 = arith.constant 0 : index
    %c0_0 = arith.constant 0 : index
    %c0_1 = arith.constant 0 : index
    %0 = vector.load %arg1[%c0, %c0_0, %c0_1] : memref<2x16x128xbf16, #tpu.memory_space<vmem>>, vector<2x16x128xbf16>
    %1 = vector.shape_cast %0 : vector<2x16x128xbf16> to vector<32x128xbf16>
    %c0_2 = arith.constant 0 : index
    %c0_3 = arith.constant 0 : index
    %2 = vector.load %arg2[%c0_2, %c0_3] : memref<128x256xbf16, #tpu.memory_space<vmem>>, vector<128x256xbf16>
    %cst = arith.constant dense<0.000000e+00> : vector<32x256xf32>
    %3 = tpu.matmul %1, %2, %cst {dimension_numbers = #tpu.dot_dimension_numbers<[1], [0], [0], [1], [0, 0, 1, 1], [], []>} : vector<32x128xbf16>, vector<128x256xbf16>, vector<32x256xf32> -> vector<32x256xf32>
    %c0_4 = arith.constant 0 : index
    %c0_5 = arith.constant 0 : index
    %4 = vector.load %arg3[%c0_4, %c0_5] : memref<1x256xf32, #tpu.memory_space<vmem>>, vector<1x256xf32>
    %5 = vector.broadcast %4 : vector<1x256xf32> to vector<32x256xf32>
    %6 = arith.addf %3, %5 : vector<32x256xf32>
    %7 = vector.extract_strided_slice %6 {offsets = [0, 0], sizes = [32, 128], strides = [1, 1]} : vector<32x256xf32> to vector<32x128xf32>
    %cst_6 = arith.constant 0.000000e+00 : f32
    %8 = vector.broadcast %cst_6 : f32 to vector<32x128xf32>
    %9 = arith.maximumf %7, %8 : vector<32x128xf32>
    %10 = vector.extract_strided_slice %6 {offsets = [0, 128], sizes = [32, 128], strides = [1, 1]} : vector<32x256xf32> to vector<32x128xf32>
    %c0_7 = arith.constant 0 : index
    %c0_8 = arith.constant 0 : index
    %11 = vector.load %arg4[%c0_7, %c0_8] : memref<1x128xf32, #tpu.memory_space<vmem>>, vector<1x128xf32>
    %12 = vector.broadcast %11 : vector<1x128xf32> to vector<32x128xf32>
    %13 = arith.mulf %9, %12 : vector<32x128xf32>
    %c0_9 = arith.constant 0 : index
    %c0_10 = arith.constant 0 : index
    %14 = vector.load %arg5[%c0_9, %c0_10] : memref<1x128xf32, #tpu.memory_space<vmem>>, vector<1x128xf32>
    %15 = vector.broadcast %14 : vector<1x128xf32> to vector<32x128xf32>
    %16 = arith.addf %13, %15 : vector<32x128xf32>
    %cst_11 = arith.constant 0.000000e+00 : f32
    %17 = vector.broadcast %cst_11 : f32 to vector<32x128xf32>
    %18 = arith.maximumf %16, %17 : vector<32x128xf32>
    %cst_12 = arith.constant 0.000000e+00 : f32
    %19 = vector.broadcast %cst_12 : f32 to vector<2x8x128xf32>
    %c0_13 = arith.constant 0 : index
    %c0_14 = arith.constant 0 : index
    %c0_15 = arith.constant 0 : index
    %20 = vector.load %arg11[%c0_13, %c0_14, %c0_15] : memref<2x32x128xf32, #tpu.memory_space<vmem>>, vector<2x8x128xf32>
    tpu.vector_store %arg11[%c0_13, %c0_14, %c0_15], %19 {strides = array<i32>} : memref<2x32x128xf32, #tpu.memory_space<vmem>>, vector<2x8x128xf32>,
    %cst_16 = arith.constant 0.000000e+00 : f32
    %21 = vector.broadcast %cst_16 : f32 to vector<2x8x128xf32>
    %c0_17 = arith.constant 0 : index
    %c24 = arith.constant 24 : index
    %c0_18 = arith.constant 0 : index
    %22 = vector.load %arg11[%c0_17, %c24, %c0_18] : memref<2x32x128xf32, #tpu.memory_space<vmem>>, vector<2x8x128xf32>
    tpu.vector_store %arg11[%c0_17, %c24, %c0_18], %21 {strides = array<i32>} : memref<2x32x128xf32, #tpu.memory_space<vmem>>, vector<2x8x128xf32>,
    %23 = vector.shape_cast %18 : vector<32x128xf32> to vector<2x16x128xf32>
    %c0_19 = arith.constant 0 : index
    %c8 = arith.constant 8 : index
    %c0_20 = arith.constant 0 : index
    %24 = vector.load %arg11[%c0_19, %c8, %c0_20] : memref<2x32x128xf32, #tpu.memory_space<vmem>>, vector<2x16x128xf32>
    tpu.vector_store %arg11[%c0_19, %c8, %c0_20], %23 {strides = array<i32>} : memref<2x32x128xf32, #tpu.memory_space<vmem>>, vector<2x16x128xf32>,
    %c0_21 = arith.constant 0 : index
    %c1 = arith.constant 1 : index
    %c0_22 = arith.constant 0 : index
    %25 = vector.load %arg11[%c0_21, %c1, %c0_22] : memref<2x32x128xf32, #tpu.memory_space<vmem>>, vector<2x16x128xf32>
    %26 = vector.shape_cast %25 : vector<2x16x128xf32> to vector<32x128xf32>
    %c0_23 = arith.constant 0 : index
    %c3 = arith.constant 3 : index
    %c0_24 = arith.constant 0 : index
    %27 = vector.load %arg11[%c0_23, %c3, %c0_24] : memref<2x32x128xf32, #tpu.memory_space<vmem>>, vector<2x16x128xf32>
    %28 = vector.shape_cast %27 : vector<2x16x128xf32> to vector<32x128xf32>
    %c0_25 = arith.constant 0 : index
    %c5 = arith.constant 5 : index
    %c0_26 = arith.constant 0 : index
    %29 = vector.load %arg11[%c0_25, %c5, %c0_26] : memref<2x32x128xf32, #tpu.memory_space<vmem>>, vector<2x16x128xf32>
    %30 = vector.shape_cast %29 : vector<2x16x128xf32> to vector<32x128xf32>
    %c0_27 = arith.constant 0 : index
    %c7 = arith.constant 7 : index
    %c0_28 = arith.constant 0 : index
    %31 = vector.load %arg11[%c0_27, %c7, %c0_28] : memref<2x32x128xf32, #tpu.memory_space<vmem>>, vector<2x16x128xf32>
    %32 = vector.shape_cast %31 : vector<2x16x128xf32> to vector<32x128xf32>
    %c0_29 = arith.constant 0 : index
    %c9 = arith.constant 9 : index
    %c0_30 = arith.constant 0 : index
    %33 = vector.load %arg11[%c0_29, %c9, %c0_30] : memref<2x32x128xf32, #tpu.memory_space<vmem>>, vector<2x16x128xf32>
    %34 = vector.shape_cast %33 : vector<2x16x128xf32> to vector<32x128xf32>
    %c0_31 = arith.constant 0 : index
    %c11 = arith.constant 11 : index
    %c0_32 = arith.constant 0 : index
    %35 = vector.load %arg11[%c0_31, %c11, %c0_32] : memref<2x32x128xf32, #tpu.memory_space<vmem>>, vector<2x16x128xf32>
    %36 = vector.shape_cast %35 : vector<2x16x128xf32> to vector<32x128xf32>
    %c0_33 = arith.constant 0 : index
    %c13 = arith.constant 13 : index
    %c0_34 = arith.constant 0 : index
    %37 = vector.load %arg11[%c0_33, %c13, %c0_34] : memref<2x32x128xf32, #tpu.memory_space<vmem>>, vector<2x16x128xf32>
    %38 = vector.shape_cast %37 : vector<2x16x128xf32> to vector<32x128xf32>
    %c0_35 = arith.constant 0 : index
    %c15 = arith.constant 15 : index
    %c0_36 = arith.constant 0 : index
    %39 = vector.load %arg11[%c0_35, %c15, %c0_36] : memref<2x32x128xf32, #tpu.memory_space<vmem>>, vector<2x16x128xf32>
    %40 = vector.shape_cast %39 : vector<2x16x128xf32> to vector<32x128xf32>
    %41 = tpu.concatenate %26, %28, %30, %32, %34, %36, %38, %40 in 1 : vector<32x128xf32>, vector<32x128xf32>, vector<32x128xf32>, vector<32x128xf32>, vector<32x128xf32>, vector<32x128xf32>, vector<32x128xf32>, vector<32x128xf32> -> vector<32x1024xf32>
    %42 = arith.truncf %41 : vector<32x1024xf32> to vector<32x1024xbf16>
    %c0_37 = arith.constant 0 : index
    %c0_38 = arith.constant 0 : index
    %43 = vector.load %arg6[%c0_37, %c0_38] : memref<1024x128xbf16, #tpu.memory_space<vmem>>, vector<1024x128xbf16>
    %cst_39 = arith.constant dense<0.000000e+00> : vector<32x128xf32>
    %44 = tpu.matmul %42, %43, %cst_39 {dimension_numbers = #tpu.dot_dimension_numbers<[1], [0], [0], [1], [0, 0, 1, 1], [], []>} : vector<32x1024xbf16>, vector<1024x128xbf16>, vector<32x128xf32> -> vector<32x128xf32>
    %c0_40 = arith.constant 0 : index
    %c0_41 = arith.constant 0 : index
    %45 = vector.load %arg7[%c0_40, %c0_41] : memref<1x128xf32, #tpu.memory_space<vmem>>, vector<1x128xf32>
    %46 = vector.broadcast %45 : vector<1x128xf32> to vector<32x128xf32>
    %47 = arith.addf %44, %46 : vector<32x128xf32>
    %cst_42 = arith.constant 0.000000e+00 : f32
    %48 = vector.broadcast %cst_42 : f32 to vector<32x128xf32>
    %49 = arith.maximumf %47, %48 : vector<32x128xf32>
    %c0_43 = arith.constant 0 : index
    %c0_44 = arith.constant 0 : index
    %50 = vector.load %arg8[%c0_43, %c0_44] : memref<1x128xf32, #tpu.memory_space<vmem>>, vector<1x128xf32>
    %51 = vector.broadcast %50 : vector<1x128xf32> to vector<32x128xf32>
    %52 = arith.mulf %49, %51 : vector<32x128xf32>
    %c0_45 = arith.constant 0 : index
    %c0_46 = arith.constant 0 : index
    %53 = vector.load %arg9[%c0_45, %c0_46] : memref<1x128xf32, #tpu.memory_space<vmem>>, vector<1x128xf32>
    %54 = vector.broadcast %53 : vector<1x128xf32> to vector<32x128xf32>
    %55 = arith.addf %52, %54 : vector<32x128xf32>
    %56 = arith.addf %55, %10 : vector<32x128xf32>
    %cst_47 = arith.constant 0.000000e+00 : f32
    %57 = vector.broadcast %cst_47 : f32 to vector<32x128xf32>
    %58 = arith.maximumf %56, %57 : vector<32x128xf32>
    %59 = vector.shape_cast %58 : vector<32x128xf32> to vector<16x2x128xf32>
    %cst_48 = arith.constant dense<0xFF800000> : vector<16x128xf32>
    %60 = vector.multi_reduction <maximumf>, %59, %cst_48 [1] : vector<16x2x128xf32> to vector<16x128xf32>
    %61 = vector.shape_cast %60 : vector<16x128xf32> to vector<2x8x128xf32>
    %c0_49 = arith.constant 0 : index
    %c0_50 = arith.constant 0 : index
    %c0_51 = arith.constant 0 : index
    %62 = vector.load %arg10[%c0_49, %c0_50, %c0_51] : memref<2x8x128xf32, #tpu.memory_space<vmem>>, vector<2x8x128xf32>
    tpu.vector_store %arg10[%c0_49, %c0_50, %c0_51], %61 {strides = array<i32>} : memref<2x8x128xf32, #tpu.memory_space<vmem>>, vector<2x8x128xf32>,
    return
  }
  func.func @transform_0(%arg0: i32) -> (i32, i32, i32) {
    %c0_i32 = arith.constant 0 : i32
    %c0_i32_0 = arith.constant 0 : i32
    %c0_i32_1 = arith.constant 0 : i32
    return %arg0, %c0_i32, %c0_i32_0 : i32, i32, i32
  }
  func.func @transform_1(%arg0: i32) -> (i32, i32) {
    %c0_i32 = arith.constant 0 : i32
    %c0_i32_0 = arith.constant 0 : i32
    %c0_i32_1 = arith.constant 0 : i32
    return %c0_i32, %c0_i32_0 : i32, i32
  }
  func.func @transform_2(%arg0: i32) -> (i32, i32) {
    %c0_i32 = arith.constant 0 : i32
    %c0_i32_0 = arith.constant 0 : i32
    %c0_i32_1 = arith.constant 0 : i32
    return %c0_i32, %c0_i32_0 : i32, i32
  }
  func.func @transform_3(%arg0: i32) -> (i32, i32) {
    %c0_i32 = arith.constant 0 : i32
    %c0_i32_0 = arith.constant 0 : i32
    %c0_i32_1 = arith.constant 0 : i32
    return %c0_i32, %c0_i32_0 : i32, i32
  }
  func.func @transform_4(%arg0: i32) -> (i32, i32) {
    %c0_i32 = arith.constant 0 : i32
    %c0_i32_0 = arith.constant 0 : i32
    %c0_i32_1 = arith.constant 0 : i32
    return %c0_i32, %c0_i32_0 : i32, i32
  }
  func.func @transform_5(%arg0: i32) -> (i32, i32) {
    %c0_i32 = arith.constant 0 : i32
    %c0_i32_0 = arith.constant 0 : i32
    %c0_i32_1 = arith.constant 0 : i32
    return %c0_i32, %c0_i32_0 : i32, i32
  }
  func.func @transform_6(%arg0: i32) -> (i32, i32) {
    %c0_i32 = arith.constant 0 : i32
    %c0_i32_0 = arith.constant 0 : i32
    %c0_i32_1 = arith.constant 0 : i32
    return %c0_i32, %c0_i32_0 : i32, i32
  }
  func.func @transform_7(%arg0: i32) -> (i32, i32) {
    %c0_i32 = arith.constant 0 : i32
    %c0_i32_0 = arith.constant 0 : i32
    %c0_i32_1 = arith.constant 0 : i32
    return %c0_i32, %c0_i32_0 : i32, i32
  }
  func.func @transform_8(%arg0: i32) -> (i32, i32) {
    %c0_i32 = arith.constant 0 : i32
    %c0_i32_0 = arith.constant 0 : i32
    %c0_i32_1 = arith.constant 0 : i32
    return %c0_i32, %c0_i32_0 : i32, i32
  }
  func.func @transform_9(%arg0: i32) -> (i32, i32, i32) {
    %c0_i32 = arith.constant 0 : i32
    %c0_i32_0 = arith.constant 0 : i32
    %c0_i32_1 = arith.constant 0 : i32
    return %arg0, %c0_i32, %c0_i32_0 : i32, i32, i32
  }
}

</mosaic_0001>

<llo_original>
// kernel: tpu_custom_call.1
$region0: #{tpu_custom_call.1}
  #allocation0 [shape = 'u32[]', space=smem, size = 0x4, offset = 0x4, fixed_abs, tag = 'smem constant byte address 0x4 - core index']
  #allocation1 [shape = 'u32[72,128]{1,0:T(1,128)}', space=vmem, size = 0x9000, scoped, tag = 'internal scratch']
  #allocation2 [shape = 'f32[2,32,128]{2,1,0:T(8,128)}', space=vmem, size = 0x8000, scoped, tag = 'scratch operand']
  %s0 = inlined_call_operand.hbm [shape: bf16[2,16,128], index: 0, kind: input, shape index: {}]
  %s1 = inlined_call_operand.hbm [shape: bf16[128,256], index: 1, kind: input, shape index: {}]
  %s2 = inlined_call_operand.hbm [shape: f32[1,256], index: 2, kind: input, shape index: {}]
  %s3 = inlined_call_operand.vmem [shape: f32[1,128], index: 3, kind: input, shape index: {}]
  %s4 = inlined_call_operand.vmem [shape: f32[1,128], index: 4, kind: input, shape index: {}]
  %s5 = inlined_call_operand.hbm [shape: bf16[1024,128], index: 5, kind: input, shape index: {}]
  %s6 = inlined_call_operand.vmem [shape: f32[1,128], index: 6, kind: input, shape index: {}]
  %s7 = inlined_call_operand.vmem [shape: f32[1,128], index: 7, kind: input, shape index: {}]
  %s8 = inlined_call_operand.vmem [shape: f32[1,128], index: 8, kind: input, shape index: {}]
  %s9 = inlined_call_operand.hbm [shape: f32[2,8,128], index: 9, kind: output, shape index: {}]
  %s10 = sld [smem:[#allocation0]]
  $region62: #{tpu_custom_call.1} parent=0
    _
  %s12 = ssub.s32 1, %s10
  %s13 = scalar_select 0, %s12, %s10
  $region1: #{tpu_custom_call.1} parent=0
    #allocation3 [shape = 'u8[8192]{0}', space=vmem, size = 0x2000, scoped, tag = 'input window, operand 0, single buffered']
    #allocation4 [shape = 's32[1]{0}', space=sflag, size = 0x4, scoped, tag = 'scoped memory for tpu_custom_call.1']
    #allocation5 [shape = 's32[1]{0}', space=sflag, size = 0x4, scoped, tag = 'scoped memory for tpu_custom_call.1']
    #allocation6 [shape = 'u8[65536]{0}', space=vmem, size = 0x10000, scoped, tag = 'input window, operand 1, single buffered']
    #allocation7 [shape = 's32[1]{0}', space=sflag, size = 0x4, scoped, tag = 'scoped memory for tpu_custom_call.1']
    #allocation8 [shape = 'u8[1024]{0}', space=vmem, size = 0x400, scoped, tag = 'input window, operand 2, single buffered']
    #allocation9 [shape = 'u8[262144]{0}', space=vmem, size = 0x40000, scoped, tag = 'input window, operand 5, single buffered']
    #allocation10 [shape = 's32[1]{0}', space=sflag, size = 0x4, scoped, tag = 'scoped memory for tpu_custom_call.1']
    #allocation11 [shape = 'u8[8192]{0}', space=vmem, size = 0x2000, scoped, tag = 'output window, operand 0, single buffered']
    %14 = vsyncpa [#allocation4], 0
    %15 = vsyncpa [#allocation7], 0
    %16 = vsyncpa [#allocation10], 0
    %17 = vsyncpa [#allocation5], 0
    // Predicated region
    $region2: #{tpu_custom_call.1} parent=1 // pred_check
      _
    $region3: #{tpu_custom_call.1} parent=1 // pred_check_branch
      %19 = sbr.rel (0) target = $region5
    $region4: #{tpu_custom_call.1} parent=1 // pred_region
      %21 = vsyncadd [#allocation4], 0
      %s22 = sshll.u32 %s0, 4
      %s23 = int_to_ptr.hbm [resolvable:$true] %s22
      %s24 = sshll.u32 [#allocation3], 4
      %s25 = int_to_ptr.vmem [resolvable:$true] %s24
      %30 = dma.hbm_to_vmem [thread:$0]  %s23, 256, %s25, [#allocation4], 64, 64, 4
    $region5: #{tpu_custom_call.1} parent=1 // pred_fallthru
      _
    // Predicated region
    $region6: #{tpu_custom_call.1} parent=1 // pred_check
      _
    $region7: #{tpu_custom_call.1} parent=1 // pred_check_branch
      %32 = sbr.rel (0) target = $region9
    $region8: #{tpu_custom_call.1} parent=1 // pred_region
      %34 = vsyncadd [#allocation7], 0
      %s35 = sshll.u32 %s1, 4
      %s36 = int_to_ptr.hbm [resolvable:$true] %s35
      %s37 = sshll.u32 [#allocation6], 4
      %s38 = int_to_ptr.vmem [resolvable:$true] %s37
      %43 = dma.hbm_to_vmem [thread:$0]  %s36, 2048, %s38, [#allocation7], 128, 128, 8
    $region9: #{tpu_custom_call.1} parent=1 // pred_fallthru
      _
    // Predicated region
    $region10: #{tpu_custom_call.1} parent=1 // pred_check
      _
    $region11: #{tpu_custom_call.1} parent=1 // pred_check_branch
      %45 = sbr.rel (0) target = $region13
    $region12: #{tpu_custom_call.1} parent=1 // pred_region
      %47 = vsyncadd [#allocation7], 0
      %s49 = sshll.u32 %s2, 4
      %s50 = int_to_ptr.hbm [resolvable:$true] %s49
      %s51 = sshll.u32 [#allocation8], 4
      %s52 = int_to_ptr.vmem [resolvable:$true] %s51
      %54 = dma.hbm_to_vmem [thread:$0]  %s50, 32, %s52, [#allocation7]
    $region13: #{tpu_custom_call.1} parent=1 // pred_fallthru
      _
    // Predicated region
    $region14: #{tpu_custom_call.1} parent=1 // pred_check
      _
    $region15: #{tpu_custom_call.1} parent=1 // pred_check_branch
      %56 = sbr.rel (0) target = $region17
    $region16: #{tpu_custom_call.1} parent=1 // pred_region
      _
    $region17: #{tpu_custom_call.1} parent=1 // pred_fallthru
      _
    // Predicated region
    $region18: #{tpu_custom_call.1} parent=1 // pred_check
      _
    $region19: #{tpu_custom_call.1} parent=1 // pred_check_branch
      %58 = sbr.rel (0) target = $region21
    $region20: #{tpu_custom_call.1} parent=1 // pred_region
      _
    $region21: #{tpu_custom_call.1} parent=1 // pred_fallthru
      _
    // Predicated region
    $region22: #{tpu_custom_call.1} parent=1 // pred_check
      _
    $region23: #{tpu_custom_call.1} parent=1 // pred_check_branch
      %60 = sbr.rel (0) target = $region25
    $region24: #{tpu_custom_call.1} parent=1 // pred_region
      %62 = vsyncadd [#allocation10], 0
      %s63 = sshll.u32 %s5, 4
      %s64 = int_to_ptr.hbm [resolvable:$true] %s63
      %s65 = sshll.u32 [#allocation9], 4
      %s66 = int_to_ptr.vmem [resolvable:$true] %s65
      %71 = dma.hbm_to_vmem [thread:$0]  %s64, 8192, %s66, [#allocation10], 64, 64, 4
    $region25: #{tpu_custom_call.1} parent=1 // pred_fallthru
      _
    // Predicated region
    $region26: #{tpu_custom_call.1} parent=1 // pred_check
      _
    $region27: #{tpu_custom_call.1} parent=1 // pred_check_branch
      %73 = sbr.rel (0) target = $region29
    $region28: #{tpu_custom_call.1} parent=1 // pred_region
      _
    $region29: #{tpu_custom_call.1} parent=1 // pred_fallthru
      _
    // Predicated region
    $region30: #{tpu_custom_call.1} parent=1 // pred_check
      _
    $region31: #{tpu_custom_call.1} parent=1 // pred_check_branch
      %75 = sbr.rel (0) target = $region33
    $region32: #{tpu_custom_call.1} parent=1 // pred_region
      _
    $region33: #{tpu_custom_call.1} parent=1 // pred_fallthru
      _
    // Predicated region
    $region34: #{tpu_custom_call.1} parent=1 // pred_check
      _
    $region35: #{tpu_custom_call.1} parent=1 // pred_check_branch
      %77 = sbr.rel (0) target = $region37
    $region36: #{tpu_custom_call.1} parent=1 // pred_region
      _
    $region37: #{tpu_custom_call.1} parent=1 // pred_fallthru
      _
    // Predicated region
    $region38: #{tpu_custom_call.1} parent=1 // pred_check
      _
    $region39: #{tpu_custom_call.1} parent=1 // pred_check_branch
      %79 = sbr.rel (0) target = $region41
    $region40: #{tpu_custom_call.1} parent=1 // pred_region
      %81 = dma.done [#allocation4], 256
    $region41: #{tpu_custom_call.1} parent=1 // pred_fallthru
      _
    // Predicated region
    $region42: #{tpu_custom_call.1} parent=1 // pred_check
      _
    $region43: #{tpu_custom_call.1} parent=1 // pred_check_branch
      %83 = sbr.rel (0) target = $region45
    $region44: #{tpu_custom_call.1} parent=1 // pred_region
      %85 = dma.done [#allocation7], 2048
    $region45: #{tpu_custom_call.1} parent=1 // pred_fallthru
      _
    // Predicated region
    $region46: #{tpu_custom_call.1} parent=1 // pred_check
      _
    $region47: #{tpu_custom_call.1} parent=1 // pred_check_branch
      %87 = sbr.rel (0) target = $region49
    $region48: #{tpu_custom_call.1} parent=1 // pred_region
      %89 = dma.done [#allocation7], 32
    $region49: #{tpu_custom_call.1} parent=1 // pred_fallthru
      _
    // Predicated region
    $region50: #{tpu_custom_call.1} parent=1 // pred_check
      _
    $region51: #{tpu_custom_call.1} parent=1 // pred_check_branch
      %91 = sbr.rel (0) target = $region53
    $region52: #{tpu_custom_call.1} parent=1 // pred_region
      %93 = dma.done [#allocation10], 8192
    $region53: #{tpu_custom_call.1} parent=1 // pred_fallthru
      _
    %v94 = vld [vmem:[#allocation3] sm:$0xf]
    %v95 = vld [vmem:[#allocation3 + $0x4] sm:$0xf]
    %v96 = vld [vmem:[#allocation3 + $0x8] sm:$0xf]
    %v97 = vld [vmem:[#allocation3 + $0xc] sm:$0xf]
    %v98 = vld [vmem:[#allocation6] sm:$0xff]
    %v99 = vld [vmem:[#allocation6 + $0x8] sm:$0xff]
    %v100 = vld [vmem:[#allocation6 + $0x10] sm:$0xff]
    %v101 = vld [vmem:[#allocation6 + $0x18] sm:$0xff]
    %v102 = vld [vmem:[#allocation6 + $0x20] sm:$0xff]
    %v103 = vld [vmem:[#allocation6 + $0x28] sm:$0xff]
    %v104 = vld [vmem:[#allocation6 + $0x30] sm:$0xff]
    %v105 = vld [vmem:[#allocation6 + $0x38] sm:$0xff]
    %v106 = vld [vmem:[#allocation6 + $0x40] sm:$0xff]
    %v107 = vld [vmem:[#allocation6 + $0x48] sm:$0xff]
    %v108 = vld [vmem:[#allocation6 + $0x50] sm:$0xff]
    %v109 = vld [vmem:[#allocation6 + $0x58] sm:$0xff]
    %v110 = vld [vmem:[#allocation6 + $0x60] sm:$0xff]
    %v111 = vld [vmem:[#allocation6 + $0x68] sm:$0xff]
    %v112 = vld [vmem:[#allocation6 + $0x70] sm:$0xff]
    %v113 = vld [vmem:[#allocation6 + $0x78] sm:$0xff]
    %v114 = vld [vmem:[#allocation8] sm:$0x3]
    %v116 = vperm.slane %v114, 0
    %v117 = vperm.slane %v114, 1
    %v124 = vunpack.c.l.b16 %v94
    %v125 = vunpack.c.l.b16 %v95
    %v126 = vunpack.c.l.b16 %v96
    %v127 = vunpack.c.l.b16 %v97
    %v128 = vpack.c.b16 %v125, %v124
    %v129 = vpack.c.b16 %v127, %v126
    %v148 = vunpack.c.l.b16 %v98
    %v149 = vunpack.c.h.b16 %v98
    %v150 = vunpack.c.l.b16 %v99
    %v151 = vunpack.c.h.b16 %v99
    %v152 = vunpack.c.l.b16 %v100
    %v153 = vunpack.c.h.b16 %v100
    %v154 = vunpack.c.l.b16 %v101
    %v155 = vunpack.c.h.b16 %v101
    %v156 = vunpack.c.l.b16 %v102
    %v157 = vunpack.c.h.b16 %v102
    %v158 = vunpack.c.l.b16 %v103
    %v159 = vunpack.c.h.b16 %v103
    %v160 = vunpack.c.l.b16 %v104
    %v161 = vunpack.c.h.b16 %v104
    %v162 = vunpack.c.l.b16 %v105
    %v163 = vunpack.c.h.b16 %v105
    %v164 = vunpack.c.l.b16 %v106
    %v165 = vunpack.c.h.b16 %v106
    %v166 = vunpack.c.l.b16 %v107
    %v167 = vunpack.c.h.b16 %v107
    %v168 = vunpack.c.l.b16 %v108
    %v169 = vunpack.c.h.b16 %v108
    %v170 = vunpack.c.l.b16 %v109
    %v171 = vunpack.c.h.b16 %v109
    %v172 = vunpack.c.l.b16 %v110
    %v173 = vunpack.c.h.b16 %v110
    %v174 = vunpack.c.l.b16 %v111
    %v175 = vunpack.c.h.b16 %v111
    %v176 = vunpack.c.l.b16 %v112
    %v177 = vunpack.c.h.b16 %v112
    %v178 = vunpack.c.l.b16 %v113
    %v179 = vunpack.c.h.b16 %v113
    %v180 = vpack.c.b16 %v150, %v148
    %v181 = vpack.c.b16 %v151, %v149
    %v182 = vpack.c.b16 %v154, %v152
    %v183 = vpack.c.b16 %v155, %v153
    %v184 = vpack.c.b16 %v158, %v156
    %v185 = vpack.c.b16 %v159, %v157
    %v186 = vpack.c.b16 %v162, %v160
    %v187 = vpack.c.b16 %v163, %v161
    %v188 = vpack.c.b16 %v166, %v164
    %v189 = vpack.c.b16 %v167, %v165
    %v190 = vpack.c.b16 %v170, %v168
    %v191 = vpack.c.b16 %v171, %v169
    %v192 = vpack.c.b16 %v174, %v172
    %v193 = vpack.c.b16 %v175, %v173
    %v194 = vpack.c.b16 %v178, %v176
    %v195 = vpack.c.b16 %v179, %v177
    %212 = vmatpush.bf16.msra.mxu0 %v194
    %213 = vmatpush.bf16.msra.mxu0 %v192
    %214 = vmatpush.bf16.msra.mxu0 %v190
    %215 = vmatpush.bf16.msra.mxu0 %v188
    %216 = vmatpush.bf16.msra.mxu0 %v186
    %217 = vmatpush.bf16.msra.mxu0 %v184
    %218 = vmatpush.bf16.msra.mxu0 %v182
    %219 = vmatpush.bf16.msra.mxu0 %v180
    %220 = vmatmul.bf16.gmra.mxu0 %v128
    %v221 = vpop.f32.mrf.mxu0
    %v222 = vadd.f32 %v116, %v221
    %v223 = vpop.f32.mrf.mxu0
    %v224 = vadd.f32 %v116, %v223
    %225 = vmatmul.bf16.gmra.mxu0 %v129
    %v226 = vpop.f32.mrf.mxu0
    %v227 = vadd.f32 %v116, %v226
    %v228 = vpop.f32.mrf.mxu0
    %v229 = vadd.f32 %v116, %v228
    %230 = vdwg.mxu0
    %231 = vmatpush.bf16.msra.mxu0 %v195
    %232 = vmatpush.bf16.msra.mxu0 %v193
    %233 = vmatpush.bf16.msra.mxu0 %v191
    %234 = vmatpush.bf16.msra.mxu0 %v189
    %235 = vmatpush.bf16.msra.mxu0 %v187
    %236 = vmatpush.bf16.msra.mxu0 %v185
    %237 = vmatpush.bf16.msra.mxu0 %v183
    %238 = vmatpush.bf16.msra.mxu0 %v181
    %239 = vmatmul.bf16.gmra.mxu0 %v128
    %v240 = vpop.f32.mrf.mxu0
    %v241 = vadd.f32 %v117, %v240
    %v242 = vpop.f32.mrf.mxu0
    %v243 = vadd.f32 %v117, %v242
    %244 = vmatmul.bf16.gmra.mxu0 %v129
    %v245 = vpop.f32.mrf.mxu0
    %v246 = vadd.f32 %v117, %v245
    %v247 = vpop.f32.mrf.mxu0
    %v248 = vadd.f32 %v117, %v247
    %249 = vdwg.mxu0
    %v250 = vmax.f32 %v222, 0.0
    %v251 = vmax.f32 %v224, 0.0
    %v252 = vmax.f32 %v227, 0.0
    %v253 = vmax.f32 %v229, 0.0
    %v254 = vld [vmem:[%s3] sm:$0x1]
    %v256 = vperm.slane %v254, 0
    %v258 = vmul.f32 %v250, %v256
    %v259 = vmul.f32 %v251, %v256
    %v260 = vmul.f32 %v252, %v256
    %v261 = vmul.f32 %v253, %v256
    %v262 = vld [vmem:[%s4] sm:$0x1]
    %v264 = vperm.slane %v262, 0
    %v266 = vadd.f32 %v258, %v264
    %v267 = vadd.f32 %v259, %v264
    %v268 = vadd.f32 %v260, %v264
    %v269 = vadd.f32 %v261, %v264
    %v270 = vmax.f32 %v266, 0.0
    %v271 = vmax.f32 %v267, 0.0
    %v272 = vmax.f32 %v268, 0.0
    %v273 = vmax.f32 %v269, 0.0
    %274 = vst [vmem:[#allocation2] sm:$0xff] 0.0
    %275 = vst [vmem:[#allocation2 + $0x20] sm:$0xff] 0.0
    %276 = vst [vmem:[#allocation2 + $0x18] sm:$0xff] 0.0
    %277 = vst [vmem:[#allocation2 + $0x38] sm:$0xff] 0.0
    %278 = vst [vmem:[#allocation2 + $0x8] sm:$0xff] %v270
    %279 = vst [vmem:[#allocation2 + $0x10] sm:$0xff] %v271
    %280 = vst [vmem:[#allocation2 + $0x28] sm:$0xff] %v272
    %281 = vst [vmem:[#allocation2 + $0x30] sm:$0xff] %v273
    %v282 = vld [vmem:[#allocation2 + $0x1] sm:$0xff]
    %v283 = vld [vmem:[#allocation2 + $0x9] sm:$0xff]
    %v284 = vld [vmem:[#allocation2 + $0x21] sm:$0xff]
    %v285 = vld [vmem:[#allocation2 + $0x29] sm:$0xff]
    %v286 = vld [vmem:[#allocation2 + $0x3] sm:$0xff]
    %v287 = vld [vmem:[#allocation2 + $0xb] sm:$0xff]
    %v288 = vld [vmem:[#allocation2 + $0x23] sm:$0xff]
    %v289 = vld [vmem:[#allocation2 + $0x2b] sm:$0xff]
    %v290 = vld [vmem:[#allocation2 + $0x5] sm:$0xff]
    %v291 = vld [vmem:[#allocation2 + $0xd] sm:$0xff]
    %v292 = vld [vmem:[#allocation2 + $0x25] sm:$0xff]
    %v293 = vld [vmem:[#allocation2 + $0x2d] sm:$0xff]
    %v294 = vld [vmem:[#allocation2 + $0x7] sm:$0xff]
    %v295 = vld [vmem:[#allocation2 + $0xf] sm:$0xff]
    %v296 = vld [vmem:[#allocation2 + $0x27] sm:$0xff]
    %v297 = vld [vmem:[#allocation2 + $0x2f] sm:$0xff]
    %v298 = vld [vmem:[#allocation2 + $0x11] sm:$0xff]
    %v299 = vld [vmem:[#allocation2 + $0x31] sm:$0xff]
    %v300 = vld [vmem:[#allocation2 + $0x13] sm:$0xff]
    %v301 = vld [vmem:[#allocation2 + $0x33] sm:$0xff]
    %v302 = vld [vmem:[#allocation2 + $0x15] sm:$0xff]
    %v303 = vld [vmem:[#allocation2 + $0x35] sm:$0xff]
    %v304 = vld [vmem:[#allocation2 + $0x17] sm:$0xff]
    %v305 = vld [vmem:[#allocation2 + $0x37] sm:$0xff]
    %v306 = vpack.c.bf16 %v283, %v282
    %v307 = vpack.c.bf16 %v287, %v286
    %v308 = vpack.c.bf16 %v291, %v290
    %v309 = vpack.c.bf16 %v295, %v294
    %v310 = vpack.c.bf16 %v298, %v283
    %v311 = vpack.c.bf16 %v300, %v287
    %v312 = vpack.c.bf16 %v302, %v291
    %v313 = vpack.c.bf16 %v304, %v295
    %v314 = vpack.c.bf16 %v285, %v284
    %v315 = vpack.c.bf16 %v289, %v288
    %v316 = vpack.c.bf16 %v293, %v292
    %v317 = vpack.c.bf16 %v297, %v296
    %v318 = vpack.c.bf16 %v299, %v285
    %v319 = vpack.c.bf16 %v301, %v289
    %v320 = vpack.c.bf16 %v303, %v293
    %v321 = vpack.c.bf16 %v305, %v297
    %v322 = vld [vmem:[#allocation9] sm:$0xf]
    %v323 = vld [vmem:[#allocation9 + $0x4] sm:$0xf]
    %v324 = vld [vmem:[#allocation9 + $0x8] sm:$0xf]
    %v325 = vld [vmem:[#allocation9 + $0xc] sm:$0xf]
    %v326 = vld [vmem:[#allocation9 + $0x10] sm:$0xf]
    %v327 = vld [vmem:[#allocation9 + $0x14] sm:$0xf]
    %v328 = vld [vmem:[#allocation9 + $0x18] sm:$0xf]
    %v329 = vld [vmem:[#allocation9 + $0x1c] sm:$0xf]
    %v330 = vld [vmem:[#allocation9 + $0x20] sm:$0xf]
    %v331 = vld [vmem:[#allocation9 + $0x24] sm:$0xf]
    %v332 = vld [vmem:[#allocation9 + $0x28] sm:$0xf]
    %v333 = vld [vmem:[#allocation9 + $0x2c] sm:$0xf]
    %v334 = vld [vmem:[#allocation9 + $0x30] sm:$0xf]
    %v335 = vld [vmem:[#allocation9 + $0x34] sm:$0xf]
    %v336 = vld [vmem:[#allocation9 + $0x38] sm:$0xf]
    %v337 = vld [vmem:[#allocation9 + $0x3c] sm:$0xf]
    %v338 = vld [vmem:[#allocation9 + $0x40] sm:$0xf]
    %v339 = vld [vmem:[#allocation9 + $0x44] sm:$0xf]
    %v340 = vld [vmem:[#allocation9 + $0x48] sm:$0xf]
    %v341 = vld [vmem:[#allocation9 + $0x4c] sm:$0xf]
    %v342 = vld [vmem:[#allocation9 + $0x50] sm:$0xf]
    %v343 = vld [vmem:[#allocation9 + $0x54] sm:$0xf]
    %v344 = vld [vmem:[#allocation9 + $0x58] sm:$0xf]
    %v345 = vld [vmem:[#allocation9 + $0x5c] sm:$0xf]
    %v346 = vld [vmem:[#allocation9 + $0x60] sm:$0xf]
    %v347 = vld [vmem:[#allocation9 + $0x64] sm:$0xf]
    %v348 = vld [vmem:[#allocation9 + $0x68] sm:$0xf]
    %v349 = vld [vmem:[#allocation9 + $0x6c] sm:$0xf]
    %v350 = vld [vmem:[#allocation9 + $0x70] sm:$0xf]
    %v351 = vld [vmem:[#allocation9 + $0x74] sm:$0xf]
    %v352 = vld [vmem:[#allocation9 + $0x78] sm:$0xf]
    %v353 = vld [vmem:[#allocation9 + $0x7c] sm:$0xf]
    %v354 = vld [vmem:[#allocation9 + $0x80] sm:$0xf]
    %v355 = vld [vmem:[#allocation9 + $0x84] sm:$0xf]
    %v356 = vld [vmem:[#allocation9 + $0x88] sm:$0xf]
    %v357 = vld [vmem:[#allocation9 + $0x8c] sm:$0xf]
    %v358 = vld [vmem:[#allocation9 + $0x90] sm:$0xf]
    %v359 = vld [vmem:[#allocation9 + $0x94] sm:$0xf]
    %v360 = vld [vmem:[#allocation9 + $0x98] sm:$0xf]
    %v361 = vld [vmem:[#allocation9 + $0x9c] sm:$0xf]
    %v362 = vld [vmem:[#allocation9 + $0xa0] sm:$0xf]
    %v363 = vld [vmem:[#allocation9 + $0xa4] sm:$0xf]
    %v364 = vld [vmem:[#allocation9 + $0xa8] sm:$0xf]
    %v365 = vld [vmem:[#allocation9 + $0xac] sm:$0xf]
    %v366 = vld [vmem:[#allocation9 + $0xb0] sm:$0xf]
    %v367 = vld [vmem:[#allocation9 + $0xb4] sm:$0xf]
    %v368 = vld [vmem:[#allocation9 + $0xb8] sm:$0xf]
    %v369 = vld [vmem:[#allocation9 + $0xbc] sm:$0xf]
    %v370 = vld [vmem:[#allocation9 + $0xc0] sm:$0xf]
    %v371 = vld [vmem:[#allocation9 + $0xc4] sm:$0xf]
    %v372 = vld [vmem:[#allocation9 + $0xc8] sm:$0xf]
    %v373 = vld [vmem:[#allocation9 + $0xcc] sm:$0xf]
    %v374 = vld [vmem:[#allocation9 + $0xd0] sm:$0xf]
    %v375 = vld [vmem:[#allocation9 + $0xd4] sm:$0xf]
    %v376 = vld [vmem:[#allocation9 + $0xd8] sm:$0xf]
    %v377 = vld [vmem:[#allocation9 + $0xdc] sm:$0xf]
    %v378 = vld [vmem:[#allocation9 + $0xe0] sm:$0xf]
    %v379 = vld [vmem:[#allocation9 + $0xe4] sm:$0xf]
    %v380 = vld [vmem:[#allocation9 + $0xe8] sm:$0xf]
    %v381 = vld [vmem:[#allocation9 + $0xec] sm:$0xf]
    %v382 = vld [vmem:[#allocation9 + $0xf0] sm:$0xf]
    %v383 = vld [vmem:[#allocation9 + $0xf4] sm:$0xf]
    %v384 = vld [vmem:[#allocation9 + $0xf8] sm:$0xf]
    %v385 = vld [vmem:[#allocation9 + $0xfc] sm:$0xf]
    %v386 = vld [vmem:[#allocation9 + $0x100] sm:$0xf]
    %v387 = vld [vmem:[#allocation9 + $0x104] sm:$0xf]
    %v388 = vld [vmem:[#allocation9 + $0x108] sm:$0xf]
    %v389 = vld [vmem:[#allocation9 + $0x10c] sm:$0xf]
    %v390 = vld [vmem:[#allocation9 + $0x110] sm:$0xf]
    %v391 = vld [vmem:[#allocation9 + $0x114] sm:$0xf]
    %v392 = vld [vmem:[#allocation9 + $0x118] sm:$0xf]
    %v393 = vld [vmem:[#allocation9 + $0x11c] sm:$0xf]
    %v394 = vld [vmem:[#allocation9 + $0x120] sm:$0xf]
    %v395 = vld [vmem:[#allocation9 + $0x124] sm:$0xf]
    %v396 = vld [vmem:[#allocation9 + $0x128] sm:$0xf]
    %v397 = vld [vmem:[#allocation9 + $0x12c] sm:$0xf]
    %v398 = vld [vmem:[#allocation9 + $0x130] sm:$0xf]
    %v399 = vld [vmem:[#allocation9 + $0x134] sm:$0xf]
    %v400 = vld [vmem:[#allocation9 + $0x138] sm:$0xf]
    %v401 = vld [vmem:[#allocation9 + $0x13c] sm:$0xf]
    %v402 = vld [vmem:[#allocation9 + $0x140] sm:$0xf]
    %v403 = vld [vmem:[#allocation9 + $0x144] sm:$0xf]
    %v404 = vld [vmem:[#allocation9 + $0x148] sm:$0xf]
    %v405 = vld [vmem:[#allocation9 + $0x14c] sm:$0xf]
    %v406 = vld [vmem:[#allocation9 + $0x150] sm:$0xf]
    %v407 = vld [vmem:[#allocation9 + $0x154] sm:$0xf]
    %v408 = vld [vmem:[#allocation9 + $0x158] sm:$0xf]
    %v409 = vld [vmem:[#allocation9 + $0x15c] sm:$0xf]
    %v410 = vld [vmem:[#allocation9 + $0x160] sm:$0xf]
    %v411 = vld [vmem:[#allocation9 + $0x164] sm:$0xf]
    %v412 = vld [vmem:[#allocation9 + $0x168] sm:$0xf]
    %v413 = vld [vmem:[#allocation9 + $0x16c] sm:$0xf]
    %v414 = vld [vmem:[#allocation9 + $0x170] sm:$0xf]
    %v415 = vld [vmem:[#allocation9 + $0x174] sm:$0xf]
    %v416 = vld [vmem:[#allocation9 + $0x178] sm:$0xf]
    %v417 = vld [vmem:[#allocation9 + $0x17c] sm:$0xf]
    %v418 = vld [vmem:[#allocation9 + $0x180] sm:$0xf]
    %v419 = vld [vmem:[#allocation9 + $0x184] sm:$0xf]
    %v420 = vld [vmem:[#allocation9 + $0x188] sm:$0xf]
    %v421 = vld [vmem:[#allocation9 + $0x18c] sm:$0xf]
    %v422 = vld [vmem:[#allocation9 + $0x190] sm:$0xf]
    %v423 = vld [vmem:[#allocation9 + $0x194] sm:$0xf]
    %v424 = vld [vmem:[#allocation9 + $0x198] sm:$0xf]
    %v425 = vld [vmem:[#allocation9 + $0x19c] sm:$0xf]
    %v426 = vld [vmem:[#allocation9 + $0x1a0] sm:$0xf]
    %v427 = vld [vmem:[#allocation9 + $0x1a4] sm:$0xf]
    %v428 = vld [vmem:[#allocation9 + $0x1a8] sm:$0xf]
    %v429 = vld [vmem:[#allocation9 + $0x1ac] sm:$0xf]
    %v430 = vld [vmem:[#allocation9 + $0x1b0] sm:$0xf]
    %v431 = vld [vmem:[#allocation9 + $0x1b4] sm:$0xf]
    %v432 = vld [vmem:[#allocation9 + $0x1b8] sm:$0xf]
    %v433 = vld [vmem:[#allocation9 + $0x1bc] sm:$0xf]
    %v434 = vld [vmem:[#allocation9 + $0x1c0] sm:$0xf]
    %v435 = vld [vmem:[#allocation9 + $0x1c4] sm:$0xf]
    %v436 = vld [vmem:[#allocation9 + $0x1c8] sm:$0xf]
    %v437 = vld [vmem:[#allocation9 + $0x1cc] sm:$0xf]
    %v438 = vld [vmem:[#allocation9 + $0x1d0] sm:$0xf]
    %v439 = vld [vmem:[#allocation9 + $0x1d4] sm:$0xf]
    %v440 = vld [vmem:[#allocation9 + $0x1d8] sm:$0xf]
    %v441 = vld [vmem:[#allocation9 + $0x1dc] sm:$0xf]
    %v442 = vld [vmem:[#allocation9 + $0x1e0] sm:$0xf]
    %v443 = vld [vmem:[#allocation9 + $0x1e4] sm:$0xf]
    %v444 = vld [vmem:[#allocation9 + $0x1e8] sm:$0xf]
    %v445 = vld [vmem:[#allocation9 + $0x1ec] sm:$0xf]
    %v446 = vld [vmem:[#allocation9 + $0x1f0] sm:$0xf]
    %v447 = vld [vmem:[#allocation9 + $0x1f4] sm:$0xf]
    %v448 = vld [vmem:[#allocation9 + $0x1f8] sm:$0xf]
    %v449 = vld [vmem:[#allocation9 + $0x1fc] sm:$0xf]
    %v450 = vld [vmem:[%s6] sm:$0x1]
    %v452 = vperm.slane %v450, 0
    %v582 = vunpack.c.l.b16 %v322
    %v583 = vunpack.c.l.b16 %v323
    %v584 = vunpack.c.l.b16 %v324
    %v585 = vunpack.c.l.b16 %v325
    %v586 = vunpack.c.l.b16 %v326
    %v587 = vunpack.c.l.b16 %v327
    %v588 = vunpack.c.l.b16 %v328
    %v589 = vunpack.c.l.b16 %v329
    %v590 = vunpack.c.l.b16 %v330
    %v591 = vunpack.c.l.b16 %v331
    %v592 = vunpack.c.l.b16 %v332
    %v593 = vunpack.c.l.b16 %v333
    %v594 = vunpack.c.l.b16 %v334
    %v595 = vunpack.c.l.b16 %v335
    %v596 = vunpack.c.l.b16 %v336
    %v597 = vunpack.c.l.b16 %v337
    %v598 = vunpack.c.l.b16 %v338
    %v599 = vunpack.c.l.b16 %v339
    %v600 = vunpack.c.l.b16 %v340
    %v601 = vunpack.c.l.b16 %v341
    %v602 = vunpack.c.l.b16 %v342
    %v603 = vunpack.c.l.b16 %v343
    %v604 = vunpack.c.l.b16 %v344
    %v605 = vunpack.c.l.b16 %v345
    %v606 = vunpack.c.l.b16 %v346
    %v607 = vunpack.c.l.b16 %v347
    %v608 = vunpack.c.l.b16 %v348
    %v609 = vunpack.c.l.b16 %v349
    %v610 = vunpack.c.l.b16 %v350
    %v611 = vunpack.c.l.b16 %v351
    %v612 = vunpack.c.l.b16 %v352
    %v613 = vunpack.c.l.b16 %v353
    %v614 = vunpack.c.l.b16 %v354
    %v615 = vunpack.c.l.b16 %v355
    %v616 = vunpack.c.l.b16 %v356
    %v617 = vunpack.c.l.b16 %v357
    %v618 = vunpack.c.l.b16 %v358
    %v619 = vunpack.c.l.b16 %v359
    %v620 = vunpack.c.l.b16 %v360
    %v621 = vunpack.c.l.b16 %v361
    %v622 = vunpack.c.l.b16 %v362
    %v623 = vunpack.c.l.b16 %v363
    %v624 = vunpack.c.l.b16 %v364
    %v625 = vunpack.c.l.b16 %v365
    %v626 = vunpack.c.l.b16 %v366
    %v627 = vunpack.c.l.b16 %v367
    %v628 = vunpack.c.l.b16 %v368
    %v629 = vunpack.c.l.b16 %v369
    %v630 = vunpack.c.l.b16 %v370
    %v631 = vunpack.c.l.b16 %v371
    %v632 = vunpack.c.l.b16 %v372
    %v633 = vunpack.c.l.b16 %v373
    %v634 = vunpack.c.l.b16 %v374
    %v635 = vunpack.c.l.b16 %v375
    %v636 = vunpack.c.l.b16 %v376
    %v637 = vunpack.c.l.b16 %v377
    %v638 = vunpack.c.l.b16 %v378
    %v639 = vunpack.c.l.b16 %v379
    %v640 = vunpack.c.l.b16 %v380
    %v641 = vunpack.c.l.b16 %v381
    %v642 = vunpack.c.l.b16 %v382
    %v643 = vunpack.c.l.b16 %v383
    %v644 = vunpack.c.l.b16 %v384
    %v645 = vunpack.c.l.b16 %v385
    %v646 = vunpack.c.l.b16 %v386
    %v647 = vunpack.c.l.b16 %v387
    %v648 = vunpack.c.l.b16 %v388
    %v649 = vunpack.c.l.b16 %v389
    %v650 = vunpack.c.l.b16 %v390
    %v651 = vunpack.c.l.b16 %v391
    %v652 = vunpack.c.l.b16 %v392
    %v653 = vunpack.c.l.b16 %v393
    %v654 = vunpack.c.l.b16 %v394
    %v655 = vunpack.c.l.b16 %v395
    %v656 = vunpack.c.l.b16 %v396
    %v657 = vunpack.c.l.b16 %v397
    %v658 = vunpack.c.l.b16 %v398
    %v659 = vunpack.c.l.b16 %v399
    %v660 = vunpack.c.l.b16 %v400
    %v661 = vunpack.c.l.b16 %v401
    %v662 = vunpack.c.l.b16 %v402
    %v663 = vunpack.c.l.b16 %v403
    %v664 = vunpack.c.l.b16 %v404
    %v665 = vunpack.c.l.b16 %v405
    %v666 = vunpack.c.l.b16 %v406
    %v667 = vunpack.c.l.b16 %v407
    %v668 = vunpack.c.l.b16 %v408
    %v669 = vunpack.c.l.b16 %v409
    %v670 = vunpack.c.l.b16 %v410
    %v671 = vunpack.c.l.b16 %v411
    %v672 = vunpack.c.l.b16 %v412
    %v673 = vunpack.c.l.b16 %v413
    %v674 = vunpack.c.l.b16 %v414
    %v675 = vunpack.c.l.b16 %v415
    %v676 = vunpack.c.l.b16 %v416
    %v677 = vunpack.c.l.b16 %v417
    %v678 = vunpack.c.l.b16 %v418
    %v679 = vunpack.c.l.b16 %v419
    %v680 = vunpack.c.l.b16 %v420
    %v681 = vunpack.c.l.b16 %v421
    %v682 = vunpack.c.l.b16 %v422
    %v683 = vunpack.c.l.b16 %v423
    %v684 = vunpack.c.l.b16 %v424
    %v685 = vunpack.c.l.b16 %v425
    %v686 = vunpack.c.l.b16 %v426
    %v687 = vunpack.c.l.b16 %v427
    %v688 = vunpack.c.l.b16 %v428
    %v689 = vunpack.c.l.b16 %v429
    %v690 = vunpack.c.l.b16 %v430
    %v691 = vunpack.c.l.b16 %v431
    %v692 = vunpack.c.l.b16 %v432
    %v693 = vunpack.c.l.b16 %v433
    %v694 = vunpack.c.l.b16 %v434
    %v695 = vunpack.c.l.b16 %v435
    %v696 = vunpack.c.l.b16 %v436
    %v697 = vunpack.c.l.b16 %v437
    %v698 = vunpack.c.l.b16 %v438
    %v699 = vunpack.c.l.b16 %v439
    %v700 = vunpack.c.l.b16 %v440
    %v701 = vunpack.c.l.b16 %v441
    %v702 = vunpack.c.l.b16 %v442
    %v703 = vunpack.c.l.b16 %v443
    %v704 = vunpack.c.l.b16 %v444
    %v705 = vunpack.c.l.b16 %v445
    %v706 = vunpack.c.l.b16 %v446
    %v707 = vunpack.c.l.b16 %v447
    %v708 = vunpack.c.l.b16 %v448
    %v709 = vunpack.c.l.b16 %v449
    %v710 = vpack.c.b16 %v583, %v582
    %v711 = vpack.c.b16 %v585, %v584
    %v712 = vpack.c.b16 %v587, %v586
    %v713 = vpack.c.b16 %v589, %v588
    %v714 = vpack.c.b16 %v591, %v590
    %v715 = vpack.c.b16 %v593, %v592
    %v716 = vpack.c.b16 %v595, %v594
    %v717 = vpack.c.b16 %v597, %v596
    %v718 = vpack.c.b16 %v599, %v598
    %v719 = vpack.c.b16 %v601, %v600
    %v720 = vpack.c.b16 %v603, %v602
    %v721 = vpack.c.b16 %v605, %v604
    %v722 = vpack.c.b16 %v607, %v606
    %v723 = vpack.c.b16 %v609, %v608
    %v724 = vpack.c.b16 %v611, %v610
    %v725 = vpack.c.b16 %v613, %v612
    %v726 = vpack.c.b16 %v615, %v614
    %v727 = vpack.c.b16 %v617, %v616
    %v728 = vpack.c.b16 %v619, %v618
    %v729 = vpack.c.b16 %v621, %v620
    %v730 = vpack.c.b16 %v623, %v622
    %v731 = vpack.c.b16 %v625, %v624
    %v732 = vpack.c.b16 %v627, %v626
    %v733 = vpack.c.b16 %v629, %v628
    %v734 = vpack.c.b16 %v631, %v630
    %v735 = vpack.c.b16 %v633, %v632
    %v736 = vpack.c.b16 %v635, %v634
    %v737 = vpack.c.b16 %v637, %v636
    %v738 = vpack.c.b16 %v639, %v638
    %v739 = vpack.c.b16 %v641, %v640
    %v740 = vpack.c.b16 %v643, %v642
    %v741 = vpack.c.b16 %v645, %v644
    %v742 = vpack.c.b16 %v647, %v646
    %v743 = vpack.c.b16 %v649, %v648
    %v744 = vpack.c.b16 %v651, %v650
    %v745 = vpack.c.b16 %v653, %v652
    %v746 = vpack.c.b16 %v655, %v654
    %v747 = vpack.c.b16 %v657, %v656
    %v748 = vpack.c.b16 %v659, %v658
    %v749 = vpack.c.b16 %v661, %v660
    %v750 = vpack.c.b16 %v663, %v662
    %v751 = vpack.c.b16 %v665, %v664
    %v752 = vpack.c.b16 %v667, %v666
    %v753 = vpack.c.b16 %v669, %v668
    %v754 = vpack.c.b16 %v671, %v670
    %v755 = vpack.c.b16 %v673, %v672
    %v756 = vpack.c.b16 %v675, %v674
    %v757 = vpack.c.b16 %v677, %v676
    %v758 = vpack.c.b16 %v679, %v678
    %v759 = vpack.c.b16 %v681, %v680
    %v760 = vpack.c.b16 %v683, %v682
    %v761 = vpack.c.b16 %v685, %v684
    %v762 = vpack.c.b16 %v687, %v686
    %v763 = vpack.c.b16 %v689, %v688
    %v764 = vpack.c.b16 %v691, %v690
    %v765 = vpack.c.b16 %v693, %v692
    %v766 = vpack.c.b16 %v695, %v694
    %v767 = vpack.c.b16 %v697, %v696
    %v768 = vpack.c.b16 %v699, %v698
    %v769 = vpack.c.b16 %v701, %v700
    %v770 = vpack.c.b16 %v703, %v702
    %v771 = vpack.c.b16 %v705, %v704
    %v772 = vpack.c.b16 %v707, %v706
    %v773 = vpack.c.b16 %v709, %v708
    %838 = vmatpush.bf16.msra.mxu0 %v717
    %839 = vmatpush.bf16.msra.mxu0 %v716
    %840 = vmatpush.bf16.msra.mxu0 %v715
    %841 = vmatpush.bf16.msra.mxu0 %v714
    %842 = vmatpush.bf16.msra.mxu0 %v713
    %843 = vmatpush.bf16.msra.mxu0 %v712
    %844 = vmatpush.bf16.msra.mxu0 %v711
    %845 = vmatpush.bf16.msra.mxu0 %v710
    %846 = vmatmul.bf16.gmra.mxu0 %v306
    %v847 = vpop.f32.mrf.mxu0
    %v848 = vadd.f32 %v452, %v847
    %v849 = vpop.f32.mrf.mxu0
    %v850 = vadd.f32 %v452, %v849
    %851 = vmatmul.bf16.gmra.mxu0 %v314
    %v852 = vpop.f32.mrf.mxu0
    %v853 = vadd.f32 %v452, %v852
    %v854 = vpop.f32.mrf.mxu0
    %v855 = vadd.f32 %v452, %v854
    %856 = vdwg.mxu0
    %857 = vmatpush.bf16.msra.mxu0 %v725
    %858 = vmatpush.bf16.msra.mxu0 %v724
    %859 = vmatpush.bf16.msra.mxu0 %v723
    %860 = vmatpush.bf16.msra.mxu0 %v722
    %861 = vmatpush.bf16.msra.mxu0 %v721
    %862 = vmatpush.bf16.msra.mxu0 %v720
    %863 = vmatpush.bf16.msra.mxu0 %v719
    %864 = vmatpush.bf16.msra.mxu0 %v718
    %865 = vmatmul.bf16.gmra.mxu0 %v307
    %v866 = vpop.f32.mrf.mxu0
    %v867 = vadd.f32 %v848, %v866
    %v868 = vpop.f32.mrf.mxu0
    %v869 = vadd.f32 %v850, %v868
    %870 = vmatmul.bf16.gmra.mxu0 %v315
    %v871 = vpop.f32.mrf.mxu0
    %v872 = vadd.f32 %v853, %v871
    %v873 = vpop.f32.mrf.mxu0
    %v874 = vadd.f32 %v855, %v873
    %875 = vdwg.mxu0
    %876 = vmatpush.bf16.msra.mxu0 %v733
    %877 = vmatpush.bf16.msra.mxu0 %v732
    %878 = vmatpush.bf16.msra.mxu0 %v731
    %879 = vmatpush.bf16.msra.mxu0 %v730
    %880 = vmatpush.bf16.msra.mxu0 %v729
    %881 = vmatpush.bf16.msra.mxu0 %v728
    %882 = vmatpush.bf16.msra.mxu0 %v727
    %883 = vmatpush.bf16.msra.mxu0 %v726
    %884 = vmatmul.bf16.gmra.mxu0 %v308
    %v885 = vpop.f32.mrf.mxu0
    %v886 = vadd.f32 %v867, %v885
    %v887 = vpop.f32.mrf.mxu0
    %v888 = vadd.f32 %v869, %v887
    %889 = vmatmul.bf16.gmra.mxu0 %v316
    %v890 = vpop.f32.mrf.mxu0
    %v891 = vadd.f32 %v872, %v890
    %v892 = vpop.f32.mrf.mxu0
    %v893 = vadd.f32 %v874, %v892
    %894 = vdwg.mxu0
    %895 = vmatpush.bf16.msra.mxu0 %v741
    %896 = vmatpush.bf16.msra.mxu0 %v740
    %897 = vmatpush.bf16.msra.mxu0 %v739
    %898 = vmatpush.bf16.msra.mxu0 %v738
    %899 = vmatpush.bf16.msra.mxu0 %v737
    %900 = vmatpush.bf16.msra.mxu0 %v736
    %901 = vmatpush.bf16.msra.mxu0 %v735
    %902 = vmatpush.bf16.msra.mxu0 %v734
    %903 = vmatmul.bf16.gmra.mxu0 %v309
    %v904 = vpop.f32.mrf.mxu0
    %v905 = vadd.f32 %v886, %v904
    %v906 = vpop.f32.mrf.mxu0
    %v907 = vadd.f32 %v888, %v906
    %908 = vmatmul.bf16.gmra.mxu0 %v317
    %v909 = vpop.f32.mrf.mxu0
    %v910 = vadd.f32 %v891, %v909
    %v911 = vpop.f32.mrf.mxu0
    %v912 = vadd.f32 %v893, %v911
    %913 = vdwg.mxu0
    %914 = vmatpush.bf16.msra.mxu0 %v749
    %915 = vmatpush.bf16.msra.mxu0 %v748
    %916 = vmatpush.bf16.msra.mxu0 %v747
    %917 = vmatpush.bf16.msra.mxu0 %v746
    %918 = vmatpush.bf16.msra.mxu0 %v745
    %919 = vmatpush.bf16.msra.mxu0 %v744
    %920 = vmatpush.bf16.msra.mxu0 %v743
    %921 = vmatpush.bf16.msra.mxu0 %v742
    %922 = vmatmul.bf16.gmra.mxu0 %v310
    %v923 = vpop.f32.mrf.mxu0
    %v924 = vadd.f32 %v905, %v923
    %v925 = vpop.f32.mrf.mxu0
    %v926 = vadd.f32 %v907, %v925
    %927 = vmatmul.bf16.gmra.mxu0 %v318
    %v928 = vpop.f32.mrf.mxu0
    %v929 = vadd.f32 %v910, %v928
    %v930 = vpop.f32.mrf.mxu0
    %v931 = vadd.f32 %v912, %v930
    %932 = vdwg.mxu0
    %933 = vmatpush.bf16.msra.mxu0 %v757
    %934 = vmatpush.bf16.msra.mxu0 %v756
    %935 = vmatpush.bf16.msra.mxu0 %v755
    %936 = vmatpush.bf16.msra.mxu0 %v754
    %937 = vmatpush.bf16.msra.mxu0 %v753
    %938 = vmatpush.bf16.msra.mxu0 %v752
    %939 = vmatpush.bf16.msra.mxu0 %v751
    %940 = vmatpush.bf16.msra.mxu0 %v750
    %941 = vmatmul.bf16.gmra.mxu0 %v311
    %v942 = vpop.f32.mrf.mxu0
    %v943 = vadd.f32 %v924, %v942
    %v944 = vpop.f32.mrf.mxu0
    %v945 = vadd.f32 %v926, %v944
    %946 = vmatmul.bf16.gmra.mxu0 %v319
    %v947 = vpop.f32.mrf.mxu0
    %v948 = vadd.f32 %v929, %v947
    %v949 = vpop.f32.mrf.mxu0
    %v950 = vadd.f32 %v931, %v949
    %951 = vdwg.mxu0
    %952 = vmatpush.bf16.msra.mxu0 %v765
    %953 = vmatpush.bf16.msra.mxu0 %v764
    %954 = vmatpush.bf16.msra.mxu0 %v763
    %955 = vmatpush.bf16.msra.mxu0 %v762
    %956 = vmatpush.bf16.msra.mxu0 %v761
    %957 = vmatpush.bf16.msra.mxu0 %v760
    %958 = vmatpush.bf16.msra.mxu0 %v759
    %959 = vmatpush.bf16.msra.mxu0 %v758
    %960 = vmatmul.bf16.gmra.mxu0 %v312
    %v961 = vpop.f32.mrf.mxu0
    %v962 = vadd.f32 %v943, %v961
    %v963 = vpop.f32.mrf.mxu0
    %v964 = vadd.f32 %v945, %v963
    %965 = vmatmul.bf16.gmra.mxu0 %v320
    %v966 = vpop.f32.mrf.mxu0
    %v967 = vadd.f32 %v948, %v966
    %v968 = vpop.f32.mrf.mxu0
    %v969 = vadd.f32 %v950, %v968
    %970 = vdwg.mxu0
    %971 = vmatpush.bf16.msra.mxu0 %v773
    %972 = vmatpush.bf16.msra.mxu0 %v772
    %973 = vmatpush.bf16.msra.mxu0 %v771
    %974 = vmatpush.bf16.msra.mxu0 %v770
    %975 = vmatpush.bf16.msra.mxu0 %v769
    %976 = vmatpush.bf16.msra.mxu0 %v768
    %977 = vmatpush.bf16.msra.mxu0 %v767
    %978 = vmatpush.bf16.msra.mxu0 %v766
    %979 = vmatmul.bf16.gmra.mxu0 %v313
    %v980 = vpop.f32.mrf.mxu0
    %v981 = vadd.f32 %v962, %v980
    %v982 = vpop.f32.mrf.mxu0
    %v983 = vadd.f32 %v964, %v982
    %984 = vmatmul.bf16.gmra.mxu0 %v321
    %v985 = vpop.f32.mrf.mxu0
    %v986 = vadd.f32 %v967, %v985
    %v987 = vpop.f32.mrf.mxu0
    %v988 = vadd.f32 %v969, %v987
    %989 = vdwg.mxu0
    %v990 = vmax.f32 %v981, 0.0
    %v991 = vmax.f32 %v983, 0.0
    %v992 = vmax.f32 %v986, 0.0
    %v993 = vmax.f32 %v988, 0.0
    %v994 = vld [vmem:[%s7] sm:$0x1]
    %v996 = vperm.slane %v994, 0
    %v998 = vmul.f32 %v990, %v996
    %v999 = vmul.f32 %v991, %v996
    %v1000 = vmul.f32 %v992, %v996
    %v1001 = vmul.f32 %v993, %v996
    %v1002 = vld [vmem:[%s8] sm:$0x1]
    %v1004 = vperm.slane %v1002, 0
    %v1006 = vadd.f32 %v998, %v1004
    %v1007 = vadd.f32 %v999, %v1004
    %v1008 = vadd.f32 %v1000, %v1004
    %v1009 = vadd.f32 %v1001, %v1004
    %v1010 = vadd.f32 %v1006, %v241
    %v1011 = vadd.f32 %v1007, %v243
    %v1012 = vadd.f32 %v1008, %v246
    %v1013 = vadd.f32 %v1009, %v248
    %v1014 = vmax.f32 %v1010, 0.0
    %v1015 = vmax.f32 %v1011, 0.0
    %v1016 = vmax.f32 %v1012, 0.0
    %v1017 = vmax.f32 %v1013, 0.0
    %v1022 = vrot.slane %v1014, 2
    %v1023 = vrot.slane %v1014, 4
    %v1024 = vrot.slane %v1014, 6
    %v1025 = vrot.slane %v1015, 2
    %v1026 = vrot.slane %v1015, 4
    %v1027 = vrot.slane %v1015, 6
    %v1028 = vrot.slane %v1016, 2
    %v1029 = vrot.slane %v1016, 4
    %v1030 = vrot.slane %v1016, 6
    %v1031 = vrot.slane %v1017, 2
    %v1032 = vrot.slane %v1017, 4
    %v1033 = vrot.slane %v1017, 6
    %vm1046 = vcmask 1041408
    %v1047 = vsel %vm1046, %v1014, -inf
    %v1048 = vrot.slane %v1047, 4
    %v1049 = vmax.f32 %v1047, %v1048
    %v1050 = vrot.slane %v1049, 2
    %v1051 = vmax.f32 %v1049, %v1050
    %v1052 = vrot.slane %v1051, 1
    %v1053 = vmax.f32 %v1051, %v1052
    %v1054 = vsel %vm1046, %v1022, -inf
    %v1055 = vrot.slane %v1054, 4
    %v1056 = vmax.f32 %v1054, %v1055
    %v1057 = vrot.slane %v1056, 2
    %v1058 = vmax.f32 %v1056, %v1057
    %v1059 = vrot.slane %v1058, 1
    %v1060 = vmax.f32 %v1058, %v1059
    %v1061 = vsel %vm1046, %v1023, -inf
    %v1062 = vrot.slane %v1061, 4
    %v1063 = vmax.f32 %v1061, %v1062
    %v1064 = vrot.slane %v1063, 2
    %v1065 = vmax.f32 %v1063, %v1064
    %v1066 = vrot.slane %v1065, 1
    %v1067 = vmax.f32 %v1065, %v1066
    %v1068 = vsel %vm1046, %v1024, -inf
    %v1069 = vrot.slane %v1068, 4
    %v1070 = vmax.f32 %v1068, %v1069
    %v1071 = vrot.slane %v1070, 2
    %v1072 = vmax.f32 %v1070, %v1071
    %v1073 = vrot.slane %v1072, 1
    %v1074 = vmax.f32 %v1072, %v1073
    %v1075 = vsel %vm1046, %v1015, -inf
    %v1076 = vrot.slane %v1075, 4
    %v1077 = vmax.f32 %v1075, %v1076
    %v1078 = vrot.slane %v1077, 2
    %v1079 = vmax.f32 %v1077, %v1078
    %v1080 = vrot.slane %v1079, 1
    %v1081 = vmax.f32 %v1079, %v1080
    %v1082 = vsel %vm1046, %v1025, -inf
    %v1083 = vrot.slane %v1082, 4
    %v1084 = vmax.f32 %v1082, %v1083
    %v1085 = vrot.slane %v1084, 2
    %v1086 = vmax.f32 %v1084, %v1085
    %v1087 = vrot.slane %v1086, 1
    %v1088 = vmax.f32 %v1086, %v1087
    %v1089 = vsel %vm1046, %v1026, -inf
    %v1090 = vrot.slane %v1089, 4
    %v1091 = vmax.f32 %v1089, %v1090
    %v1092 = vrot.slane %v1091, 2
    %v1093 = vmax.f32 %v1091, %v1092
    %v1094 = vrot.slane %v1093, 1
    %v1095 = vmax.f32 %v1093, %v1094
    %v1096 = vsel %vm1046, %v1027, -inf
    %v1097 = vrot.slane %v1096, 4
    %v1098 = vmax.f32 %v1096, %v1097
    %v1099 = vrot.slane %v1098, 2
    %v1100 = vmax.f32 %v1098, %v1099
    %v1101 = vrot.slane %v1100, 1
    %v1102 = vmax.f32 %v1100, %v1101
    %v1103 = vsel %vm1046, %v1016, -inf
    %v1104 = vrot.slane %v1103, 4
    %v1105 = vmax.f32 %v1103, %v1104
    %v1106 = vrot.slane %v1105, 2
    %v1107 = vmax.f32 %v1105, %v1106
    %v1108 = vrot.slane %v1107, 1
    %v1109 = vmax.f32 %v1107, %v1108
    %v1110 = vsel %vm1046, %v1028, -inf
    %v1111 = vrot.slane %v1110, 4
    %v1112 = vmax.f32 %v1110, %v1111
    %v1113 = vrot.slane %v1112, 2
    %v1114 = vmax.f32 %v1112, %v1113
    %v1115 = vrot.slane %v1114, 1
    %v1116 = vmax.f32 %v1114, %v1115
    %v1117 = vsel %vm1046, %v1029, -inf
    %v1118 = vrot.slane %v1117, 4
    %v1119 = vmax.f32 %v1117, %v1118
    %v1120 = vrot.slane %v1119, 2
    %v1121 = vmax.f32 %v1119, %v1120
    %v1122 = vrot.slane %v1121, 1
    %v1123 = vmax.f32 %v1121, %v1122
    %v1124 = vsel %vm1046, %v1030, -inf
    %v1125 = vrot.slane %v1124, 4
    %v1126 = vmax.f32 %v1124, %v1125
    %v1127 = vrot.slane %v1126, 2
    %v1128 = vmax.f32 %v1126, %v1127
    %v1129 = vrot.slane %v1128, 1
    %v1130 = vmax.f32 %v1128, %v1129
    %v1131 = vsel %vm1046, %v1017, -inf
    %v1132 = vrot.slane %v1131, 4
    %v1133 = vmax.f32 %v1131, %v1132
    %v1134 = vrot.slane %v1133, 2
    %v1135 = vmax.f32 %v1133, %v1134
    %v1136 = vrot.slane %v1135, 1
    %v1137 = vmax.f32 %v1135, %v1136
    %v1138 = vsel %vm1046, %v1031, -inf
    %v1139 = vrot.slane %v1138, 4
    %v1140 = vmax.f32 %v1138, %v1139
    %v1141 = vrot.slane %v1140, 2
    %v1142 = vmax.f32 %v1140, %v1141
    %v1143 = vrot.slane %v1142, 1
    %v1144 = vmax.f32 %v1142, %v1143
    %v1145 = vsel %vm1046, %v1032, -inf
    %v1146 = vrot.slane %v1145, 4
    %v1147 = vmax.f32 %v1145, %v1146
    %v1148 = vrot.slane %v1147, 2
    %v1149 = vmax.f32 %v1147, %v1148
    %v1150 = vrot.slane %v1149, 1
    %v1151 = vmax.f32 %v1149, %v1150
    %v1152 = vsel %vm1046, %v1033, -inf
    %v1153 = vrot.slane %v1152, 4
    %v1154 = vmax.f32 %v1152, %v1153
    %v1155 = vrot.slane %v1154, 2
    %v1156 = vmax.f32 %v1154, %v1155
    %v1157 = vrot.slane %v1156, 1
    %v1158 = vmax.f32 %v1156, %v1157
    %vm1175 = vcmask 1041409
    %v1176 = vsel %vm1175, %v1060, %v1053
    %vm1177 = vcmask 1042434
    %v1178 = vsel %vm1177, %v1067, %v1176
    %vm1179 = vcmask 1043459
    %v1180 = vsel %vm1179, %v1074, %v1178
    %vm1181 = vcmask 1044484
    %v1182 = vsel %vm1181, %v1081, %v1180
    %vm1183 = vcmask 1045509
    %v1184 = vsel %vm1183, %v1088, %v1182
    %vm1185 = vcmask 1046534
    %v1186 = vsel %vm1185, %v1095, %v1184
    %vm1187 = vcmask 1047559
    %v1188 = vsel %vm1187, %v1102, %v1186
    %v1189 = vsel %vm1175, %v1116, %v1109
    %v1190 = vsel %vm1177, %v1123, %v1189
    %v1191 = vsel %vm1179, %v1130, %v1190
    %v1192 = vsel %vm1181, %v1137, %v1191
    %v1193 = vsel %vm1183, %v1144, %v1192
    %v1194 = vsel %vm1185, %v1151, %v1193
    %v1195 = vsel %vm1187, %v1158, %v1194
    %1198 = vst [vmem:[#allocation11] sm:$0xff] %v1188
    %1199 = vst [vmem:[#allocation11 + $0x8] sm:$0xff] %v1195
    // Predicated region
    $region54: #{tpu_custom_call.1} parent=1 // pred_check
      _
    $region55: #{tpu_custom_call.1} parent=1 // pred_check_branch
      %1201 = sbr.rel (0) target = $region57
    $region56: #{tpu_custom_call.1} parent=1 // pred_region
      %1203 = vsyncadd [#allocation5], 0
      %s1204 = sshll.u32 [#allocation11], 4
      %s1205 = int_to_ptr.vmem [resolvable:$true] %s1204
      %s1206 = sshll.u32 %s9, 4
      %s1207 = int_to_ptr.hbm [resolvable:$true] %s1206
      %1212 = dma.vmem_to_hbm [thread:$0]  %s1205, 256, %s1207, [#allocation5], 128, 128, 8
    $region57: #{tpu_custom_call.1} parent=1 // pred_fallthru
      _
    // Predicated region
    $region58: #{tpu_custom_call.1} parent=1 // pred_check
      _
    $region59: #{tpu_custom_call.1} parent=1 // pred_check_branch
      %1214 = sbr.rel (0) target = $region61
    $region60: #{tpu_custom_call.1} parent=1 // pred_region
      %1216 = dma.done [#allocation5], 256
    $region61: #{tpu_custom_call.1} parent=1 // pred_fallthru
      _
    %1217 = vsyncpa [#allocation4], 1
    %1218 = vsyncpa [#allocation7], 1
    %1219 = vsyncpa [#allocation10], 1
    %1220 = vsyncpa [#allocation5], 1

</llo_original>
